<compile_context>
chip_gen: v7x
topology: tpu7x:2x2x1
jax: 0.10.0
libtpu: 0.0.40
codegen_flags: <defaults>
</compile_context>

<pallas_src>
import functools

import jax
import jax.numpy as jnp
import numpy as np
from jax.experimental import pallas as pl
from jax.experimental.pallas import tpu as pltpu


def _round_up(x, m):
    return ((x + m - 1) // m) * m


# ----------------------------------------------------------------------------
# Fused kernel: per grid step, Bt graphs packed block-diagonally, all layers.
# ----------------------------------------------------------------------------
def _fused_gcn_kernel(adj_ref, x_ref, mask_ref, rep_ref, *rest,
                      num_layers, compute_dtype):
    out_ref = rest[-1]
    wb_refs = rest[:-1]                              # w0, b0, w1, b1, ...

    a = adj_ref[...]                                 # (M, N) adjacency rows, flat
    m = a.shape[0]

    # ---- Block-diagonal A_hat over the Bt graphs of this tile --------------
    # rep_ref (N, M): rep[j, c] = 1 iff (c mod N == j), so (a @ rep)[r, c] =
    # a[r, c mod N] — one tiny MXU matmul replicates the N adjacency columns
    # into every graph's column band.  mask_ref zeroes cross-graph bands and
    # the iota select forces the diagonal to 1 (add_loop=True).
    a_rep = jnp.dot(a, rep_ref[...], preferred_element_type=jnp.float32)  # (M, M)
    row = jax.lax.broadcasted_iota(jnp.int32, (m, m), 0)
    col = jax.lax.broadcasted_iota(jnp.int32, (m, m), 1)
    a_hat = jnp.where(row == col, 1.0, a_rep * mask_ref[...])             # f32

    # ---- Symmetric normalization folded into row scalings ------------------
    #   A_norm @ h == dinv * (A_hat @ (dinv * h))
    deg = jnp.maximum(jnp.sum(a_hat, axis=-1, keepdims=True), 1.0)        # (M, 1)
    dinv = jax.lax.rsqrt(deg)                                             # f32
    a_hat_c = a_hat.astype(compute_dtype)

    # ---- Layers: h stays a flat (M, F) f32 slab; matmul operands are cast to
    # compute_dtype (bf16 by default) with f32 accumulation --------------------
    h = x_ref[...].astype(jnp.float32)
    for l in range(num_layers):
        w = wb_refs[2 * l][...].astype(compute_dtype)    # (f_in, f_out)
        b = wb_refs[2 * l + 1][...]                      # (1, f_out) f32
        f_in, f_out = w.shape
        if f_in <= f_out:
            # Propagate first: the O(M^2) term runs at the narrower width f_in.
            t = jnp.dot(a_hat_c, (dinv * h).astype(compute_dtype),
                        preferred_element_type=jnp.float32)
            h = jnp.dot((dinv * t).astype(compute_dtype), w,
                        preferred_element_type=jnp.float32) + b
        else:
            # Project first: the O(M^2) term runs at the narrower width f_out.
            t = jnp.dot(h.astype(compute_dtype), w,
                        preferred_element_type=jnp.float32)
            t = jnp.dot(a_hat_c, (dinv * t).astype(compute_dtype),
                        preferred_element_type=jnp.float32)
            h = dinv * t + b
        if l < num_layers - 1:
            h = jnp.maximum(h, 0.0)      # relu; dropout is identity at inference

    out_ref[...] = h.astype(out_ref.dtype)   # lane-dense (last dim % 128 == 0)


# ----------------------------------------------------------------------------
# VMEM accounting + batch-tile chooser
# ----------------------------------------------------------------------------
def _vmem_step_bytes(bt, N, feat_dims, adj_itemsize, comp_itemsize, weight_bytes):
    M = bt * N
    f_in0, f_out = feat_dims[0], feat_dims[-1]
    f_max = max(feat_dims)
    b = 2 * M * N * adj_itemsize                    # adj block (double-buffered)
    b += 2 * M * f_in0 * 4                          # x block
    b += 2 * M * f_out * 4                          # out block
    b += 2 * (M * M * 4 + N * M * adj_itemsize)     # structural mask + replicator
    b += M * M * (4 + comp_itemsize)                # block-diag A_hat (f32 + cast)
    b += 4 * M * f_max * 4                          # live h / t / y f32 values
    b += 2 * weight_bytes                           # resident weights & biases
    return b


def _choose_batch_tile(B, N, feat_dims, adj_itemsize, comp_itemsize, weight_bytes,
                       vmem_budget=40 << 20, max_rows=512):
    """Graphs per grid step.  Largest tile whose full per-step VMEM footprint
    fits the budget (headroom under v7x's 64 MiB) and whose block-diagonal tile
    is at most `max_rows` tall.  Single-TC chips (v5e/v6e) want the biggest
    tile; only split to >=2 grid steps (v7x megacore) when each half still
    feeds a >=256-row matmul."""
    divisors = [d for d in range(1, B + 1) if B % d == 0]
    # BlockSpec rule: last two block dims must be (8,128)-divisible or full.
    legal = [d for d in divisors if (d * N) % 8 == 0 or d == B]
    ok = [d for d in legal
          if (d * N <= max_rows or d == min(legal))
          and _vmem_step_bytes(d, N, feat_dims, adj_itemsize, comp_itemsize,
                               weight_bytes) <= vmem_budget]
    bt = max(ok) if ok else min(legal)
    if B // bt < 2:
        alt = [d for d in (ok if ok else legal) if B // d >= 2 and d * N >= 256]
        if alt:
            bt = max(alt)
    return bt


# ----------------------------------------------------------------------------
# Wrapper
# ----------------------------------------------------------------------------
def dense_gcn_forward(x, adj, params, *, batch_tile=None, use_bf16_matmul=True):
    B, N, f_in0 = x.shape
    assert adj.shape == (B, N, N)
    L = len(params)
    f_out_last = params[-1][0].shape[1]
    f_out_pad = _round_up(f_out_last, 128)           # lane-dense output width

    compute_dtype = jnp.bfloat16 if use_bf16_matmul else jnp.float32
    # 0/1 adjacency is exact in bf16 and halves the dominant HBM read.
    # TODO(synk): pass use_bf16_matmul=False for weighted adjacencies that are
    # not exactly bf16-representable.
    adj_in = adj.astype(compute_dtype) if use_bf16_matmul else adj

    # Pad the last layer's output width to a multiple of 128: the padded columns
    # are exactly zero (zero weight columns, zero bias) and are sliced away.
    padded_params = []
    for li, (w, b) in enumerate(params):
        if li == L - 1 and f_out_pad != f_out_last:
            w = jnp.pad(w, ((0, 0), (0, f_out_pad - f_out_last)))
            b = jnp.pad(b, ((0, f_out_pad - f_out_last),))
        padded_params.append((w, b))

    feat_dims = [f_in0] + [w.shape[1] for (w, _) in padded_params]
    weight_bytes = sum(w.size * w.dtype.itemsize + b.size * b.dtype.itemsize
                       for (w, b) in padded_params)
    adj_itemsize = jnp.dtype(adj_in.dtype).itemsize
    comp_itemsize = jnp.dtype(compute_dtype).itemsize

    bt = batch_tile if batch_tile is not None else _choose_batch_tile(
        B, N, feat_dims, adj_itemsize, comp_itemsize, weight_bytes)
    assert B % bt == 0
    M = bt * N
    grid = (B // bt,)

    # Structural constants (depend only on (bt, N)); tiny, VMEM-resident.
    gid = np.arange(M) // N
    same_graph = (gid[:, None] == gid[None, :]).astype(np.float32)       # (M, M)
    replicate = (np.arange(M)[None, :] % N
                 == np.arange(N)[:, None]).astype(np.float32)            # (N, M)
    mask_arr = jnp.asarray(same_graph)
    rep_arr = jnp.asarray(replicate, dtype=adj_in.dtype)

    x_flat = x.reshape(B * N, f_in0)                 # flat, no in-kernel reshapes
    adj_flat = adj_in.reshape(B * N, N)

    wb_inputs, wb_specs = [], []
    # TODO(synk): pipeline_mode=pl.Buffered(1) here would single-buffer these
    # constant-index, grid-invariant operands.
    for (w, b) in padded_params:
        f_i, f_o = w.shape
        wb_inputs += [w, b.reshape(1, f_o)]
        wb_specs += [pl.BlockSpec((f_i, f_o), lambda i: (0, 0)),
                     pl.BlockSpec((1, f_o), lambda i: (0, 0))]

    est = _vmem_step_bytes(bt, N, feat_dims, adj_itemsize, comp_itemsize,
                           weight_bytes)
    vmem_limit = int(min(48 << 20, max(2 * est, 32 << 20)))   # < v7x 64 MiB

    kernel = functools.partial(_fused_gcn_kernel, num_layers=L,
                               compute_dtype=compute_dtype)

    out = pl.pallas_call(
        kernel,
        out_shape=jax.ShapeDtypeStruct((B * N, f_out_pad), x.dtype),
        grid_spec=pltpu.PrefetchScalarGridSpec(
            num_scalar_prefetch=0,
            grid=grid,
            in_specs=[
                pl.BlockSpec((M, N), lambda i: (i, 0)),       # adjacency rows
                pl.BlockSpec((M, f_in0), lambda i: (i, 0)),   # features, flat
                pl.BlockSpec((M, M), lambda i: (0, 0)),       # same-graph mask
                pl.BlockSpec((N, M), lambda i: (0, 0)),       # column replicator
            ] + wb_specs,
            out_specs=pl.BlockSpec((M, f_out_pad), lambda i: (i, 0)),
        ),
        compiler_params=pltpu.CompilerParams(
            dimension_semantics=("parallel",),
            vmem_limit_bytes=vmem_limit,
        ),
    )(adj_flat, x_flat, mask_arr, rep_arr, *wb_inputs)

    return out[:, :f_out_last].reshape(B, N, f_out_last)


# ----------------------------------------------------------------------------
# Parameter init (glorot-uniform weights, zero bias — matches DenseGCNConv)
# ----------------------------------------------------------------------------
def init_params(key, in_channels, hidden_channels, out_channels, L):
    dims = [in_channels] + [hidden_channels] * (L - 1) + [out_channels]
    params = []
    for layer in range(L):
        f_in, f_out = dims[layer], dims[layer + 1]
        key, sub = jax.random.split(key)
        limit = (6.0 / (f_in + f_out)) ** 0.5
        w = jax.random.uniform(sub, (f_in, f_out), jnp.float32, -limit, limit)
        b = jnp.zeros((f_out,), jnp.float32)
        params.append((w, b))
    return params


if __name__ == "__main__":
    B, N = 2, 16
    in_channels, hidden_channels, out_channels = 8, 32, 16
    L = 3                     # args.L
    dropout = 0.5             # args.dropout (identity at inference)

    key = jax.random.PRNGKey(0)
    kx, ka, kp = jax.random.split(key, 3)

    x = jax.random.normal(kx, (B, N, in_channels), jnp.float32)
    # symmetric 0/1 adjacency, zero diagonal (kernel adds self loops)
    a_raw = jax.random.uniform(ka, (B, N, N)) < 0.3
    adj = jnp.triu(a_raw.astype(jnp.float32), k=1)
    adj = adj + jnp.swapaxes(adj, -1, -2)

    params = init_params(kp, in_channels, hidden_channels, out_channels, L)

    # plain-JAX f32 reference
    eye = jnp.eye(N, dtype=jnp.float32)
    a_hat = adj * (1.0 - eye) + eye
    deg = jnp.maximum(a_hat.sum(-1), 1.0)
    dinv = deg ** -0.5
    a_norm = dinv[:, :, None] * a_hat * dinv[:, None, :]
    ref = x
    for i, (w, b) in enumerate(params):
        ref = jnp.einsum("bij,bjf->bif", a_norm, ref @ w) + b
        if i < len(params) - 1:
            ref = jnp.maximum(ref, 0.0)

    # Exact-precision path (f32 MXU operands): tight check.
    out_f32 = dense_gcn_forward(x, adj, params, use_bf16_matmul=False)
    jax.block_until_ready(out_f32)
    assert out_f32.shape == (B, N, out_channels)
    assert jnp.allclose(out_f32, ref, atol=2e-3, rtol=2e-3), (
        float(jnp.max(jnp.abs(out_f32 - ref))))

    # Default path (bf16 MXU operands, f32 accumulation): looser check.
    out_bf16 = dense_gcn_forward(x, adj, params)
    jax.block_until_ready(out_bf16)
    assert out_bf16.shape == (B, N, out_channels)
    assert jnp.allclose(out_bf16, ref, atol=5e-2, rtol=5e-2), (
        float(jnp.max(jnp.abs(out_bf16 - ref))))

    print("KERNEL_OK")
</pallas_src>

<mosaic_0001>
module attributes {stable_mosaic.version = 11 : i64} {
  func.func @_fused_gcn_kernel(%arg0: i32, %arg1: memref<32x16xf32, #tpu.memory_space<vmem>>, %arg2: memref<32x8xf32, #tpu.memory_space<vmem>>, %arg3: memref<32x32xf32, #tpu.memory_space<vmem>>, %arg4: memref<16x32xf32, #tpu.memory_space<vmem>>, %arg5: memref<8x32xf32, #tpu.memory_space<vmem>>, %arg6: memref<1x32xf32, #tpu.memory_space<vmem>>, %arg7: memref<32x32xf32, #tpu.memory_space<vmem>>, %arg8: memref<1x32xf32, #tpu.memory_space<vmem>>, %arg9: memref<32x128xf32, #tpu.memory_space<vmem>>, %arg10: memref<1x128xf32, #tpu.memory_space<vmem>>, %arg11: memref<32x128xf32, #tpu.memory_space<vmem>>) attributes {dimension_semantics = [#tpu.dimension_semantics<parallel>], iteration_bounds = array<i64: 1>, scalar_prefetch = 0 : i64, scratch_operands = 0 : i64, tpu.core_type = #tpu.core_type<tc>, window_params = [{transform_indices = @transform_0, window_bounds = array<i64: 32, 16>}, {transform_indices = @transform_1, window_bounds = array<i64: 32, 8>}, {pipeline_mode = #tpu.pipeline_mode<synchronous>, transform_indices = @transform_2, window_bounds = array<i64: 32, 32>}, {pipeline_mode = #tpu.pipeline_mode<synchronous>, transform_indices = @transform_3, window_bounds = array<i64: 16, 32>}, {pipeline_mode = #tpu.pipeline_mode<synchronous>, transform_indices = @transform_4, window_bounds = array<i64: 8, 32>}, {pipeline_mode = #tpu.pipeline_mode<synchronous>, transform_indices = @transform_5, window_bounds = array<i64: 1, 32>}, {pipeline_mode = #tpu.pipeline_mode<synchronous>, transform_indices = @transform_6, window_bounds = array<i64: 32, 32>}, {pipeline_mode = #tpu.pipeline_mode<synchronous>, transform_indices = @transform_7, window_bounds = array<i64: 1, 32>}, {pipeline_mode = #tpu.pipeline_mode<synchronous>, transform_indices = @transform_8, window_bounds = array<i64: 32, 128>}, {pipeline_mode = #tpu.pipeline_mode<synchronous>, transform_indices = @transform_9, window_bounds = array<i64: 1, 128>}, {transform_indices = @transform_10, window_bounds = array<i64: 32, 128>}]} {
    %c0 = arith.constant 0 : index
    %c0_0 = arith.constant 0 : index
    %0 = vector.load %arg1[%c0, %c0_0] : memref<32x16xf32, #tpu.memory_space<vmem>>, vector<32x16xf32>
    %c0_1 = arith.constant 0 : index
    %c0_2 = arith.constant 0 : index
    %1 = vector.load %arg4[%c0_1, %c0_2] : memref<16x32xf32, #tpu.memory_space<vmem>>, vector<16x32xf32>
    %cst = arith.constant dense<0.000000e+00> : vector<32x32xf32>
    %2 = tpu.matmul %0, %1, %cst {dimension_numbers = #tpu.dot_dimension_numbers<[1], [0], [0], [1], [0, 0, 1, 1], [], []>} : vector<32x16xf32>, vector<16x32xf32>, vector<32x32xf32> -> vector<32x32xf32>
    %3 = tpu.iota {dimensions = array<i32: 0>} : vector<32x32xi32>
    %4 = tpu.iota {dimensions = array<i32: 1>} : vector<32x32xi32>
    %5 = arith.cmpi eq, %3, %4 : vector<32x32xi32>
    %c0_3 = arith.constant 0 : index
    %c0_4 = arith.constant 0 : index
    %6 = vector.load %arg3[%c0_3, %c0_4] : memref<32x32xf32, #tpu.memory_space<vmem>>, vector<32x32xf32>
    %7 = arith.mulf %2, %6 : vector<32x32xf32>
    %cst_5 = arith.constant 1.000000e+00 : f32
    %8 = vector.broadcast %cst_5 : f32 to vector<32x32xf32>
    %9 = arith.select %5, %8, %7 : vector<32x32xi1>, vector<32x32xf32>
    %cst_6 = arith.constant dense<0.000000e+00> : vector<32xf32>
    %10 = vector.multi_reduction <add>, %9, %cst_6 [1] : vector<32x32xf32> to vector<32xf32>
    %11 = vector.shape_cast %10 : vector<32xf32> to vector<32x1xf32>
    %cst_7 = arith.constant 1.000000e+00 : f32
    %12 = vector.broadcast %cst_7 : f32 to vector<32x1xf32>
    %13 = arith.maximumf %11, %12 : vector<32x1xf32>
    %14 = math.rsqrt %13 : vector<32x1xf32>
    %c0_8 = arith.constant 0 : index
    %c0_9 = arith.constant 0 : index
    %15 = vector.load %arg2[%c0_8, %c0_9] : memref<32x8xf32, #tpu.memory_space<vmem>>, vector<32x8xf32>
    %c0_10 = arith.constant 0 : index
    %c0_11 = arith.constant 0 : index
    %16 = vector.load %arg5[%c0_10, %c0_11] : memref<8x32xf32, #tpu.memory_space<vmem>>, vector<8x32xf32>
    %c0_12 = arith.constant 0 : index
    %c0_13 = arith.constant 0 : index
    %17 = vector.load %arg6[%c0_12, %c0_13] : memref<1x32xf32, #tpu.memory_space<vmem>>, vector<1x32xf32>
    %18 = vector.broadcast %14 : vector<32x1xf32> to vector<32x8xf32>
    %19 = arith.mulf %18, %15 : vector<32x8xf32>
    %cst_14 = arith.constant dense<0.000000e+00> : vector<32x8xf32>
    %20 = tpu.matmul %9, %19, %cst_14 {dimension_numbers = #tpu.dot_dimension_numbers<[1], [0], [0], [1], [0, 0, 1, 1], [], []>} : vector<32x32xf32>, vector<32x8xf32>, vector<32x8xf32> -> vector<32x8xf32>
    %21 = vector.broadcast %14 : vector<32x1xf32> to vector<32x8xf32>
    %22 = arith.mulf %21, %20 : vector<32x8xf32>
    %cst_15 = arith.constant dense<0.000000e+00> : vector<32x32xf32>
    %23 = tpu.matmul %22, %16, %cst_15 {dimension_numbers = #tpu.dot_dimension_numbers<[1], [0], [0], [1], [0, 0, 1, 1], [], []>} : vector<32x8xf32>, vector<8x32xf32>, vector<32x32xf32> -> vector<32x32xf32>
    %24 = vector.broadcast %17 : vector<1x32xf32> to vector<32x32xf32>
    %25 = arith.addf %23, %24 : vector<32x32xf32>
    %cst_16 = arith.constant 0.000000e+00 : f32
    %26 = vector.broadcast %cst_16 : f32 to vector<32x32xf32>
    %27 = arith.maximumf %25, %26 : vector<32x32xf32>
    %c0_17 = arith.constant 0 : index
    %c0_18 = arith.constant 0 : index
    %28 = vector.load %arg7[%c0_17, %c0_18] : memref<32x32xf32, #tpu.memory_space<vmem>>, vector<32x32xf32>
    %c0_19 = arith.constant 0 : index
    %c0_20 = arith.constant 0 : index
    %29 = vector.load %arg8[%c0_19, %c0_20] : memref<1x32xf32, #tpu.memory_space<vmem>>, vector<1x32xf32>
    %30 = vector.broadcast %14 : vector<32x1xf32> to vector<32x32xf32>
    %31 = arith.mulf %30, %27 : vector<32x32xf32>
    %cst_21 = arith.constant dense<0.000000e+00> : vector<32x32xf32>
    %32 = tpu.matmul %9, %31, %cst_21 {dimension_numbers = #tpu.dot_dimension_numbers<[1], [0], [0], [1], [0, 0, 1, 1], [], []>} : vector<32x32xf32>, vector<32x32xf32>, vector<32x32xf32> -> vector<32x32xf32>
    %33 = vector.broadcast %14 : vector<32x1xf32> to vector<32x32xf32>
    %34 = arith.mulf %33, %32 : vector<32x32xf32>
    %cst_22 = arith.constant dense<0.000000e+00> : vector<32x32xf32>
    %35 = tpu.matmul %34, %28, %cst_22 {dimension_numbers = #tpu.dot_dimension_numbers<[1], [0], [0], [1], [0, 0, 1, 1], [], []>} : vector<32x32xf32>, vector<32x32xf32>, vector<32x32xf32> -> vector<32x32xf32>
    %36 = vector.broadcast %29 : vector<1x32xf32> to vector<32x32xf32>
    %37 = arith.addf %35, %36 : vector<32x32xf32>
    %cst_23 = arith.constant 0.000000e+00 : f32
    %38 = vector.broadcast %cst_23 : f32 to vector<32x32xf32>
    %39 = arith.maximumf %37, %38 : vector<32x32xf32>
    %c0_24 = arith.constant 0 : index
    %c0_25 = arith.constant 0 : index
    %40 = vector.load %arg9[%c0_24, %c0_25] : memref<32x128xf32, #tpu.memory_space<vmem>>, vector<32x128xf32>
    %c0_26 = arith.constant 0 : index
    %c0_27 = arith.constant 0 : index
    %41 = vector.load %arg10[%c0_26, %c0_27] : memref<1x128xf32, #tpu.memory_space<vmem>>, vector<1x128xf32>
    %42 = vector.broadcast %14 : vector<32x1xf32> to vector<32x32xf32>
    %43 = arith.mulf %42, %39 : vector<32x32xf32>
    %cst_28 = arith.constant dense<0.000000e+00> : vector<32x32xf32>
    %44 = tpu.matmul %9, %43, %cst_28 {dimension_numbers = #tpu.dot_dimension_numbers<[1], [0], [0], [1], [0, 0, 1, 1], [], []>} : vector<32x32xf32>, vector<32x32xf32>, vector<32x32xf32> -> vector<32x32xf32>
    %45 = vector.broadcast %14 : vector<32x1xf32> to vector<32x32xf32>
    %46 = arith.mulf %45, %44 : vector<32x32xf32>
    %cst_29 = arith.constant dense<0.000000e+00> : vector<32x128xf32>
    %47 = tpu.matmul %46, %40, %cst_29 {dimension_numbers = #tpu.dot_dimension_numbers<[1], [0], [0], [1], [0, 0, 1, 1], [], []>} : vector<32x32xf32>, vector<32x128xf32>, vector<32x128xf32> -> vector<32x128xf32>
    %48 = vector.broadcast %41 : vector<1x128xf32> to vector<32x128xf32>
    %49 = arith.addf %47, %48 : vector<32x128xf32>
    %c0_30 = arith.constant 0 : index
    %c0_31 = arith.constant 0 : index
    %50 = vector.load %arg11[%c0_30, %c0_31] : memref<32x128xf32, #tpu.memory_space<vmem>>, vector<32x128xf32>
    tpu.vector_store %arg11[%c0_30, %c0_31], %49 {strides = array<i32>} : memref<32x128xf32, #tpu.memory_space<vmem>>, vector<32x128xf32>,
    return
  }
  func.func @transform_0(%arg0: i32) -> (i32, i32) {
    %c0_i32 = arith.constant 0 : i32
    %c0_i32_0 = arith.constant 0 : i32
    return %arg0, %c0_i32 : i32, i32
  }
  func.func @transform_1(%arg0: i32) -> (i32, i32) {
    %c0_i32 = arith.constant 0 : i32
    %c0_i32_0 = arith.constant 0 : i32
    return %arg0, %c0_i32 : i32, i32
  }
  func.func @transform_2(%arg0: i32) -> (i32, i32) {
    %c0_i32 = arith.constant 0 : i32
    %c0_i32_0 = arith.constant 0 : i32
    %c0_i32_1 = arith.constant 0 : i32
    return %c0_i32, %c0_i32_0 : i32, i32
  }
  func.func @transform_3(%arg0: i32) -> (i32, i32) {
    %c0_i32 = arith.constant 0 : i32
    %c0_i32_0 = arith.constant 0 : i32
    %c0_i32_1 = arith.constant 0 : i32
    return %c0_i32, %c0_i32_0 : i32, i32
  }
  func.func @transform_4(%arg0: i32) -> (i32, i32) {
    %c0_i32 = arith.constant 0 : i32
    %c0_i32_0 = arith.constant 0 : i32
    %c0_i32_1 = arith.constant 0 : i32
    return %c0_i32, %c0_i32_0 : i32, i32
  }
  func.func @transform_5(%arg0: i32) -> (i32, i32) {
    %c0_i32 = arith.constant 0 : i32
    %c0_i32_0 = arith.constant 0 : i32
    %c0_i32_1 = arith.constant 0 : i32
    return %c0_i32, %c0_i32_0 : i32, i32
  }
  func.func @transform_6(%arg0: i32) -> (i32, i32) {
    %c0_i32 = arith.constant 0 : i32
    %c0_i32_0 = arith.constant 0 : i32
    %c0_i32_1 = arith.constant 0 : i32
    return %c0_i32, %c0_i32_0 : i32, i32
  }
  func.func @transform_7(%arg0: i32) -> (i32, i32) {
    %c0_i32 = arith.constant 0 : i32
    %c0_i32_0 = arith.constant 0 : i32
    %c0_i32_1 = arith.constant 0 : i32
    return %c0_i32, %c0_i32_0 : i32, i32
  }
  func.func @transform_8(%arg0: i32) -> (i32, i32) {
    %c0_i32 = arith.constant 0 : i32
    %c0_i32_0 = arith.constant 0 : i32
    %c0_i32_1 = arith.constant 0 : i32
    return %c0_i32, %c0_i32_0 : i32, i32
  }
  func.func @transform_9(%arg0: i32) -> (i32, i32) {
    %c0_i32 = arith.constant 0 : i32
    %c0_i32_0 = arith.constant 0 : i32
    %c0_i32_1 = arith.constant 0 : i32
    return %c0_i32, %c0_i32_0 : i32, i32
  }
  func.func @transform_10(%arg0: i32) -> (i32, i32) {
    %c0_i32 = arith.constant 0 : i32
    %c0_i32_0 = arith.constant 0 : i32
    return %arg0, %c0_i32 : i32, i32
  }
}

</mosaic_0001>

<llo_original>
// kernel: tpu_custom_call.1
$region0: #{tpu_custom_call.1}
  #allocation0 [shape = 'u32[]', space=smem, size = 0x4, offset = 0x4, fixed_abs, tag = 'smem constant byte address 0x4 - core index']
  #allocation1 [shape = 'u32[144,128]{1,0:T(1,128)}', space=vmem, size = 0x12000, scoped, tag = 'internal scratch']
  %s0 = inlined_call_operand.vmem [shape: f32[32,16], index: 0, kind: input, shape index: {}]
  %s1 = inlined_call_operand.vmem [shape: f32[32,8], index: 1, kind: input, shape index: {}]
  %s2 = inlined_call_operand.vmem [shape: f32[32,32], index: 2, kind: input, shape index: {}]
  %s3 = inlined_call_operand.hbm [shape: f32[16,32], index: 3, kind: input, shape index: {}]
  %s4 = inlined_call_operand.hbm [shape: f32[8,32], index: 4, kind: input, shape index: {}]
  %s5 = inlined_call_operand.vmem [shape: f32[1,32], index: 5, kind: input, shape index: {}]
  %s6 = inlined_call_operand.vmem [shape: f32[32,32], index: 6, kind: input, shape index: {}]
  %s7 = inlined_call_operand.vmem [shape: f32[1,32], index: 7, kind: input, shape index: {}]
  %s8 = inlined_call_operand.vmem [shape: f32[32,128], index: 8, kind: input, shape index: {}]
  %s9 = inlined_call_operand.vmem [shape: f32[1,128], index: 9, kind: input, shape index: {}]
  %s10 = inlined_call_operand.hbm [shape: f32[32,128], index: 10, kind: output, shape index: {}]
  %s11 = sld [smem:[#allocation0]]
  $region58: #{tpu_custom_call.1} parent=0
    _
  %s13 = ssub.s32 1, %s11
  %s14 = scalar_select 0, %s13, %s11
  $region1: #{tpu_custom_call.1} parent=0
    #allocation2 [shape = 'u8[8192]{0}', space=vmem, size = 0x2000, scoped, tag = 'input window, operand 3, single buffered']
    #allocation3 [shape = 's32[1]{0}', space=sflag, size = 0x4, scoped, tag = 'scoped memory for tpu_custom_call.1']
    #allocation4 [shape = 's32[1]{0}', space=sflag, size = 0x4, scoped, tag = 'scoped memory for tpu_custom_call.1']
    #allocation5 [shape = 'u8[4096]{0}', space=vmem, size = 0x1000, scoped, tag = 'input window, operand 4, single buffered']
    #allocation6 [shape = 's32[1]{0}', space=sflag, size = 0x4, scoped, tag = 'scoped memory for tpu_custom_call.1']
    #allocation7 [shape = 'u8[16384]{0}', space=vmem, size = 0x4000, scoped, tag = 'output window, operand 0, single buffered']
    %15 = vsyncpa [#allocation3], 0
    %16 = vsyncpa [#allocation6], 0
    %17 = vsyncpa [#allocation4], 0
    // Predicated region
    $region2: #{tpu_custom_call.1} parent=1 // pred_check
      _
    $region3: #{tpu_custom_call.1} parent=1 // pred_check_branch
      %19 = sbr.rel (0) target = $region5
    $region4: #{tpu_custom_call.1} parent=1 // pred_region
      _
    $region5: #{tpu_custom_call.1} parent=1 // pred_fallthru
      _
    // Predicated region
    $region6: #{tpu_custom_call.1} parent=1 // pred_check
      _
    $region7: #{tpu_custom_call.1} parent=1 // pred_check_branch
      %21 = sbr.rel (0) target = $region9
    $region8: #{tpu_custom_call.1} parent=1 // pred_region
      _
    $region9: #{tpu_custom_call.1} parent=1 // pred_fallthru
      _
    // Predicated region
    $region10: #{tpu_custom_call.1} parent=1 // pred_check
      _
    $region11: #{tpu_custom_call.1} parent=1 // pred_check_branch
      %23 = sbr.rel (0) target = $region13
    $region12: #{tpu_custom_call.1} parent=1 // pred_region
      _
    $region13: #{tpu_custom_call.1} parent=1 // pred_fallthru
      _
    // Predicated region
    $region14: #{tpu_custom_call.1} parent=1 // pred_check
      _
    $region15: #{tpu_custom_call.1} parent=1 // pred_check_branch
      %25 = sbr.rel (0) target = $region17
    $region16: #{tpu_custom_call.1} parent=1 // pred_region
      %s27 = ssub.s32 256, 256
      %28 = vsyncadd [#allocation3], %s27
      %s29 = sshll.u32 [#allocation2], 4
      %s30 = int_to_ptr.vmem [resolvable:$true] %s29
      %35 = dma.hbm_to_vmem [thread:$0]  %s3, 256, %s30, [#allocation3], 128, 128, 8
    $region17: #{tpu_custom_call.1} parent=1 // pred_fallthru
      _
    // Predicated region
    $region18: #{tpu_custom_call.1} parent=1 // pred_check
      _
    $region19: #{tpu_custom_call.1} parent=1 // pred_check_branch
      %37 = sbr.rel (0) target = $region21
    $region20: #{tpu_custom_call.1} parent=1 // pred_region
      %s39 = ssub.s32 128, 128
      %40 = vsyncadd [#allocation6], %s39
      %s42 = sshll.u32 [#allocation5], 4
      %s43 = int_to_ptr.vmem [resolvable:$true] %s42
      %45 = dma.hbm_to_vmem [thread:$0]  %s4, 128, %s43, [#allocation6]
    $region21: #{tpu_custom_call.1} parent=1 // pred_fallthru
      _
    // Predicated region
    $region22: #{tpu_custom_call.1} parent=1 // pred_check
      _
    $region23: #{tpu_custom_call.1} parent=1 // pred_check_branch
      %47 = sbr.rel (0) target = $region25
    $region24: #{tpu_custom_call.1} parent=1 // pred_region
      _
    $region25: #{tpu_custom_call.1} parent=1 // pred_fallthru
      _
    // Predicated region
    $region26: #{tpu_custom_call.1} parent=1 // pred_check
      _
    $region27: #{tpu_custom_call.1} parent=1 // pred_check_branch
      %49 = sbr.rel (0) target = $region29
    $region28: #{tpu_custom_call.1} parent=1 // pred_region
      _
    $region29: #{tpu_custom_call.1} parent=1 // pred_fallthru
      _
    // Predicated region
    $region30: #{tpu_custom_call.1} parent=1 // pred_check
      _
    $region31: #{tpu_custom_call.1} parent=1 // pred_check_branch
      %51 = sbr.rel (0) target = $region33
    $region32: #{tpu_custom_call.1} parent=1 // pred_region
      _
    $region33: #{tpu_custom_call.1} parent=1 // pred_fallthru
      _
    // Predicated region
    $region34: #{tpu_custom_call.1} parent=1 // pred_check
      _
    $region35: #{tpu_custom_call.1} parent=1 // pred_check_branch
      %53 = sbr.rel (0) target = $region37
    $region36: #{tpu_custom_call.1} parent=1 // pred_region
      _
    $region37: #{tpu_custom_call.1} parent=1 // pred_fallthru
      _
    // Predicated region
    $region38: #{tpu_custom_call.1} parent=1 // pred_check
      _
    $region39: #{tpu_custom_call.1} parent=1 // pred_check_branch
      %55 = sbr.rel (0) target = $region41
    $region40: #{tpu_custom_call.1} parent=1 // pred_region
      _
    $region41: #{tpu_custom_call.1} parent=1 // pred_fallthru
      _
    // Predicated region
    $region42: #{tpu_custom_call.1} parent=1 // pred_check
      _
    $region43: #{tpu_custom_call.1} parent=1 // pred_check_branch
      %57 = sbr.rel (0) target = $region45
    $region44: #{tpu_custom_call.1} parent=1 // pred_region
      %58 = dma.done [#allocation3], 256
    $region45: #{tpu_custom_call.1} parent=1 // pred_fallthru
      _
    // Predicated region
    $region46: #{tpu_custom_call.1} parent=1 // pred_check
      _
    $region47: #{tpu_custom_call.1} parent=1 // pred_check_branch
      %60 = sbr.rel (0) target = $region49
    $region48: #{tpu_custom_call.1} parent=1 // pred_region
      %61 = dma.done [#allocation6], 128
    $region49: #{tpu_custom_call.1} parent=1 // pred_fallthru
      _
    %v62 = vld [vmem:[%s0] sm:$0xff]
    %v63 = vld [vmem:[%s0 + $0x8] sm:$0xff]
    %v64 = vld [vmem:[%s0 + $0x10] sm:$0xff]
    %v65 = vld [vmem:[%s0 + $0x18] sm:$0xff]
    %v66 = vld [vmem:[#allocation2] sm:$0xff]
    %v67 = vld [vmem:[#allocation2 + $0x8] sm:$0xff]
    %vm68 = vcmask 130048
    %v70 = vsel %vm68, %v62, 0
    %v73 = vsel %vm68, %v63, 0
    %v76 = vsel %vm68, %v64, 0
    %v79 = vsel %vm68, %v65, 0
    %81 = vmatprep.subr.mxu0 0.0
    %82 = vmatpush1.msra.mxu0 %v66
    %83 = vmatprep.subr.mxu0 0.0
    %84 = vmatpush1.msra.mxu0 %v67
    %85 = vmatprep.subr.mxu0 0.0
    %86 = vmatpush1.msra.mxu0 0.0
    %87 = vmatprep.subr.mxu0 0.0
    %88 = vmatpush1.msra.mxu0 0.0
    %89 = vmatprep.subr.mxu0 0.0
    %90 = vmatpush1.msra.mxu0 0.0
    %91 = vmatprep.subr.mxu0 0.0
    %92 = vmatpush1.msra.mxu0 0.0
    %93 = vmatprep.subr.mxu0 0.0
    %94 = vmatpush1.msra.mxu0 0.0
    %95 = vmatprep.subr.mxu0 0.0
    %96 = vmatpush1.msra.mxu0 0.0
    %97 = vmatprep.subr.mxu0 0.0
    %98 = vmatpush1.msra.mxu0 0.0
    %99 = vmatprep.subr.mxu0 0.0
    %100 = vmatpush1.msra.mxu0 0.0
    %101 = vmatprep.subr.mxu0 0.0
    %102 = vmatpush1.msra.mxu0 0.0
    %103 = vmatprep.subr.mxu0 0.0
    %104 = vmatpush1.msra.mxu0 0.0
    %105 = vmatprep.subr.mxu0 0.0
    %106 = vmatpush1.msra.mxu0 0.0
    %107 = vmatprep.subr.mxu0 0.0
    %108 = vmatpush1.msra.mxu0 0.0
    %109 = vmatprep.subr.mxu0 0.0
    %110 = vmatpush1.msra.mxu0 0.0
    %111 = vmatprep.subr.mxu0 0.0
    %112 = vmatpush1.msra.mxu0 0.0
    %113 = vmatprep.subr.mxu0 0.0
    %114 = vmatpush1.msra.mxu0 0.0
    %115 = vmatprep.subr.mxu0 0.0
    %116 = vmatpush1.msra.mxu0 0.0
    %117 = vmatprep.subr.mxu0 0.0
    %118 = vmatpush1.msra.mxu0 0.0
    %119 = vmatprep.subr.mxu0 0.0
    %120 = vmatpush1.msra.mxu0 0.0
    %121 = vmatprep.subr.mxu0 0.0
    %122 = vmatpush1.msra.mxu0 0.0
    %123 = vmatprep.subr.mxu0 0.0
    %124 = vmatpush1.msra.mxu0 0.0
    %125 = vmatprep.subr.mxu0 0.0
    %126 = vmatpush1.msra.mxu0 0.0
    %127 = vmatprep.subr.mxu0 0.0
    %128 = vmatpush1.msra.mxu0 0.0
    %129 = vmatprep.subr.mxu0 0.0
    %130 = vmatpush1.msra.mxu0 0.0
    %131 = vmatprep.subr.mxu0 0.0
    %132 = vmatpush1.msra.mxu0 0.0
    %133 = vmatprep.subr.mxu0 0.0
    %134 = vmatpush1.msra.mxu0 0.0
    %135 = vmatprep.subr.mxu0 0.0
    %136 = vmatpush1.msra.mxu0 0.0
    %137 = vmatprep.subr.mxu0 0.0
    %138 = vmatpush1.msra.mxu0 0.0
    %139 = vmatprep.subr.mxu0 0.0
    %140 = vmatpush1.msra.mxu0 0.0
    %141 = vmatprep.subr.mxu0 0.0
    %142 = vmatpush1.msra.mxu0 0.0
    %143 = vmatprep.subr.mxu0 0.0
    %144 = vmatpush1.msra.mxu0 0.0
    %145 = vmatprep.mubr.f32.mxu0 0.0
    %146 = vmatmul.mubr.f32.gmra.mrb[0].mxu0 %v70
    %v147 = vpop.f32.mrb[0].mxu0
    %v148 = vadd.f32 0.0, %v147
    %v149 = vpop.f32.mrb[0].mxu0
    %150 = vmatprep.mubr.f32.mxu0 0.0
    %151 = vmatmul.mubr.f32.gmra.mrb[0].mxu0 %v73
    %v152 = vpop.f32.mrb[0].mxu0
    %v153 = vadd.f32 0.0, %v152
    %v154 = vpop.f32.mrb[0].mxu0
    %155 = vmatprep.mubr.f32.mxu0 0.0
    %156 = vmatmul.mubr.f32.gmra.mrb[0].mxu0 %v76
    %v157 = vpop.f32.mrb[0].mxu0
    %v158 = vadd.f32 0.0, %v157
    %v159 = vpop.f32.mrb[0].mxu0
    %160 = vmatprep.mubr.f32.mxu0 0.0
    %161 = vmatmul.mubr.f32.gmra.mrb[0].mxu0 %v79
    %v162 = vpop.f32.mrb[0].mxu0
    %v163 = vadd.f32 0.0, %v162
    %v164 = vpop.f32.mrb[0].mxu0
    %165 = vdwg.mxu0
    %v166 = vlaneseq
    %v167 = vshrl.u32 %v166, 7
    %v168 = vadd.s32 %v167, 8
    %v169 = vadd.s32 %v167, 16
    %v170 = vadd.s32 %v167, 24
    %v171 = vlaneseq
    %v172 = vand.u32 %v171, 127
    %vm173 = vcmp.eq.s32.totalorder %v167, %v172
    %vm174 = vcmp.eq.s32.totalorder %v168, %v172
    %vm175 = vcmp.eq.s32.totalorder %v169, %v172
    %vm176 = vcmp.eq.s32.totalorder %v170, %v172
    %v177 = vld [vmem:[%s2] sm:$0xff]
    %v178 = vld [vmem:[%s2 + $0x8] sm:$0xff]
    %v179 = vld [vmem:[%s2 + $0x10] sm:$0xff]
    %v180 = vld [vmem:[%s2 + $0x18] sm:$0xff]
    %v181 = vmul.f32 %v148, %v177
    %v182 = vmul.f32 %v153, %v178
    %v183 = vmul.f32 %v158, %v179
    %v184 = vmul.f32 %v163, %v180
    %v185 = vsel %vm173, 1.0, %v181
    %v186 = vsel %vm174, 1.0, %v182
    %v187 = vsel %vm175, 1.0, %v183
    %v188 = vsel %vm176, 1.0, %v184
    %vm189 = vcmask 261120
    %v190 = vsel %vm189, %v185, 0.0
    %191 = vadd.xlane.f32.xlu0 %v190
    %v192 = vpop.xlane.xlu0 %191
    %v193 = vsel %vm189, %v186, 0.0
    %194 = vadd.xlane.f32.xlu0 %v193
    %v195 = vpop.xlane.xlu0 %194
    %v196 = vsel %vm189, %v187, 0.0
    %197 = vadd.xlane.f32.xlu0 %v196
    %v198 = vpop.xlane.xlu0 %197
    %v199 = vsel %vm189, %v188, 0.0
    %200 = vadd.xlane.f32.xlu0 %v199
    %v201 = vpop.xlane.xlu0 %200
    %v202 = vmax.f32 %v192, 1.0
    %v203 = vmax.f32 %v195, 1.0
    %v204 = vmax.f32 %v198, 1.0
    %v205 = vmax.f32 %v201, 1.0
    %v206 = vrsqrt.pop %v202
    %v207 = vrsqrt.pop %v203
    %v208 = vrsqrt.pop %v204
    %v209 = vrsqrt.pop %v205
    %v210 = vld [vmem:[%s1] sm:$0xff]
    %v211 = vld [vmem:[%s1 + $0x8] sm:$0xff]
    %v212 = vld [vmem:[%s1 + $0x10] sm:$0xff]
    %v213 = vld [vmem:[%s1 + $0x18] sm:$0xff]
    %v214 = vld [vmem:[#allocation5] sm:$0xff]
    %v215 = vld [vmem:[%s5] sm:$0x1]
    %v216 = vmul.f32 %v206, %v210
    %v217 = vmul.f32 %v207, %v211
    %v218 = vmul.f32 %v208, %v212
    %v219 = vmul.f32 %v209, %v213
    %v221 = vsel %vm189, %v185, 0
    %v224 = vsel %vm189, %v186, 0
    %v227 = vsel %vm189, %v187, 0
    %v230 = vsel %vm189, %v188, 0
    %232 = vmatprep.subr.mxu0 0.0
    %233 = vmatpush1.msra.mxu0 %v216
    %234 = vmatprep.subr.mxu0 0.0
    %235 = vmatpush1.msra.mxu0 %v217
    %236 = vmatprep.subr.mxu0 0.0
    %237 = vmatpush1.msra.mxu0 %v218
    %238 = vmatprep.subr.mxu0 0.0
    %239 = vmatpush1.msra.mxu0 %v219
    %240 = vmatprep.subr.mxu0 0.0
    %241 = vmatpush1.msra.mxu0 0.0
    %242 = vmatprep.subr.mxu0 0.0
    %243 = vmatpush1.msra.mxu0 0.0
    %244 = vmatprep.subr.mxu0 0.0
    %245 = vmatpush1.msra.mxu0 0.0
    %246 = vmatprep.subr.mxu0 0.0
    %247 = vmatpush1.msra.mxu0 0.0
    %248 = vmatprep.subr.mxu0 0.0
    %249 = vmatpush1.msra.mxu0 0.0
    %250 = vmatprep.subr.mxu0 0.0
    %251 = vmatpush1.msra.mxu0 0.0
    %252 = vmatprep.subr.mxu0 0.0
    %253 = vmatpush1.msra.mxu0 0.0
    %254 = vmatprep.subr.mxu0 0.0
    %255 = vmatpush1.msra.mxu0 0.0
    %256 = vmatprep.subr.mxu0 0.0
    %257 = vmatpush1.msra.mxu0 0.0
    %258 = vmatprep.subr.mxu0 0.0
    %259 = vmatpush1.msra.mxu0 0.0
    %260 = vmatprep.subr.mxu0 0.0
    %261 = vmatpush1.msra.mxu0 0.0
    %262 = vmatprep.subr.mxu0 0.0
    %263 = vmatpush1.msra.mxu0 0.0
    %264 = vmatprep.subr.mxu0 0.0
    %265 = vmatpush1.msra.mxu0 0.0
    %266 = vmatprep.subr.mxu0 0.0
    %267 = vmatpush1.msra.mxu0 0.0
    %268 = vmatprep.subr.mxu0 0.0
    %269 = vmatpush1.msra.mxu0 0.0
    %270 = vmatprep.subr.mxu0 0.0
    %271 = vmatpush1.msra.mxu0 0.0
    %272 = vmatprep.subr.mxu0 0.0
    %273 = vmatpush1.msra.mxu0 0.0
    %274 = vmatprep.subr.mxu0 0.0
    %275 = vmatpush1.msra.mxu0 0.0
    %276 = vmatprep.subr.mxu0 0.0
    %277 = vmatpush1.msra.mxu0 0.0
    %278 = vmatprep.subr.mxu0 0.0
    %279 = vmatpush1.msra.mxu0 0.0
    %280 = vmatprep.subr.mxu0 0.0
    %281 = vmatpush1.msra.mxu0 0.0
    %282 = vmatprep.subr.mxu0 0.0
    %283 = vmatpush1.msra.mxu0 0.0
    %284 = vmatprep.subr.mxu0 0.0
    %285 = vmatpush1.msra.mxu0 0.0
    %286 = vmatprep.subr.mxu0 0.0
    %287 = vmatpush1.msra.mxu0 0.0
    %288 = vmatprep.subr.mxu0 0.0
    %289 = vmatpush1.msra.mxu0 0.0
    %290 = vmatprep.subr.mxu0 0.0
    %291 = vmatpush1.msra.mxu0 0.0
    %292 = vmatprep.subr.mxu0 0.0
    %293 = vmatpush1.msra.mxu0 0.0
    %294 = vmatprep.subr.mxu0 0.0
    %295 = vmatpush1.msra.mxu0 0.0
    %296 = vmatprep.mubr.f32.mxu0 0.0
    %297 = vmatmul.mubr.f32.gmra.mrb[0].mxu0 %v221
    %v298 = vpop.f32.mrb[0].mxu0
    %v299 = vadd.f32 0.0, %v298
    %v300 = vpop.f32.mrb[0].mxu0
    %301 = vmatprep.mubr.f32.mxu0 0.0
    %302 = vmatmul.mubr.f32.gmra.mrb[0].mxu0 %v224
    %v303 = vpop.f32.mrb[0].mxu0
    %v304 = vadd.f32 0.0, %v303
    %v305 = vpop.f32.mrb[0].mxu0
    %306 = vmatprep.mubr.f32.mxu0 0.0
    %307 = vmatmul.mubr.f32.gmra.mrb[0].mxu0 %v227
    %v308 = vpop.f32.mrb[0].mxu0
    %v309 = vadd.f32 0.0, %v308
    %v310 = vpop.f32.mrb[0].mxu0
    %311 = vmatprep.mubr.f32.mxu0 0.0
    %312 = vmatmul.mubr.f32.gmra.mrb[0].mxu0 %v230
    %v313 = vpop.f32.mrb[0].mxu0
    %v314 = vadd.f32 0.0, %v313
    %v315 = vpop.f32.mrb[0].mxu0
    %316 = vdwg.mxu0
    %v317 = vmul.f32 %v206, %v299
    %v318 = vmul.f32 %v207, %v304
    %v319 = vmul.f32 %v208, %v309
    %v320 = vmul.f32 %v209, %v314
    %v322 = vlaneseq
    %v323 = vshrl.u32 %v322, 7
    %v324 = vsub.s32 0, %v323
    %v325 = vrot.slane %v215, %v324
    %vm327 = vcmask 64512
    %v329 = vsel %vm327, %v317, 0
    %v332 = vsel %vm327, %v318, 0
    %v335 = vsel %vm327, %v319, 0
    %v338 = vsel %vm327, %v320, 0
    %340 = vmatprep.subr.mxu0 0.0
    %341 = vmatpush1.msra.mxu0 %v214
    %342 = vmatprep.subr.mxu0 0.0
    %343 = vmatpush1.msra.mxu0 0.0
    %344 = vmatprep.subr.mxu0 0.0
    %345 = vmatpush1.msra.mxu0 0.0
    %346 = vmatprep.subr.mxu0 0.0
    %347 = vmatpush1.msra.mxu0 0.0
    %348 = vmatprep.subr.mxu0 0.0
    %349 = vmatpush1.msra.mxu0 0.0
    %350 = vmatprep.subr.mxu0 0.0
    %351 = vmatpush1.msra.mxu0 0.0
    %352 = vmatprep.subr.mxu0 0.0
    %353 = vmatpush1.msra.mxu0 0.0
    %354 = vmatprep.subr.mxu0 0.0
    %355 = vmatpush1.msra.mxu0 0.0
    %356 = vmatprep.subr.mxu0 0.0
    %357 = vmatpush1.msra.mxu0 0.0
    %358 = vmatprep.subr.mxu0 0.0
    %359 = vmatpush1.msra.mxu0 0.0
    %360 = vmatprep.subr.mxu0 0.0
    %361 = vmatpush1.msra.mxu0 0.0
    %362 = vmatprep.subr.mxu0 0.0
    %363 = vmatpush1.msra.mxu0 0.0
    %364 = vmatprep.subr.mxu0 0.0
    %365 = vmatpush1.msra.mxu0 0.0
    %366 = vmatprep.subr.mxu0 0.0
    %367 = vmatpush1.msra.mxu0 0.0
    %368 = vmatprep.subr.mxu0 0.0
    %369 = vmatpush1.msra.mxu0 0.0
    %370 = vmatprep.subr.mxu0 0.0
    %371 = vmatpush1.msra.mxu0 0.0
    %372 = vmatprep.subr.mxu0 0.0
    %373 = vmatpush1.msra.mxu0 0.0
    %374 = vmatprep.subr.mxu0 0.0
    %375 = vmatpush1.msra.mxu0 0.0
    %376 = vmatprep.subr.mxu0 0.0
    %377 = vmatpush1.msra.mxu0 0.0
    %378 = vmatprep.subr.mxu0 0.0
    %379 = vmatpush1.msra.mxu0 0.0
    %380 = vmatprep.subr.mxu0 0.0
    %381 = vmatpush1.msra.mxu0 0.0
    %382 = vmatprep.subr.mxu0 0.0
    %383 = vmatpush1.msra.mxu0 0.0
    %384 = vmatprep.subr.mxu0 0.0
    %385 = vmatpush1.msra.mxu0 0.0
    %386 = vmatprep.subr.mxu0 0.0
    %387 = vmatpush1.msra.mxu0 0.0
    %388 = vmatprep.subr.mxu0 0.0
    %389 = vmatpush1.msra.mxu0 0.0
    %390 = vmatprep.subr.mxu0 0.0
    %391 = vmatpush1.msra.mxu0 0.0
    %392 = vmatprep.subr.mxu0 0.0
    %393 = vmatpush1.msra.mxu0 0.0
    %394 = vmatprep.subr.mxu0 0.0
    %395 = vmatpush1.msra.mxu0 0.0
    %396 = vmatprep.subr.mxu0 0.0
    %397 = vmatpush1.msra.mxu0 0.0
    %398 = vmatprep.subr.mxu0 0.0
    %399 = vmatpush1.msra.mxu0 0.0
    %400 = vmatprep.subr.mxu0 0.0
    %401 = vmatpush1.msra.mxu0 0.0
    %402 = vmatprep.subr.mxu0 0.0
    %403 = vmatpush1.msra.mxu0 0.0
    %404 = vmatprep.mubr.f32.mxu0 0.0
    %405 = vmatmul.mubr.f32.gmra.mrb[0].mxu0 %v329
    %v406 = vpop.f32.mrb[0].mxu0
    %v407 = vadd.f32 %v325, %v406
    %v408 = vpop.f32.mrb[0].mxu0
    %409 = vmatprep.mubr.f32.mxu0 0.0
    %410 = vmatmul.mubr.f32.gmra.mrb[0].mxu0 %v332
    %v411 = vpop.f32.mrb[0].mxu0
    %v412 = vadd.f32 %v325, %v411
    %v413 = vpop.f32.mrb[0].mxu0
    %414 = vmatprep.mubr.f32.mxu0 0.0
    %415 = vmatmul.mubr.f32.gmra.mrb[0].mxu0 %v335
    %v416 = vpop.f32.mrb[0].mxu0
    %v417 = vadd.f32 %v325, %v416
    %v418 = vpop.f32.mrb[0].mxu0
    %419 = vmatprep.mubr.f32.mxu0 0.0
    %420 = vmatmul.mubr.f32.gmra.mrb[0].mxu0 %v338
    %v421 = vpop.f32.mrb[0].mxu0
    %v422 = vadd.f32 %v325, %v421
    %v423 = vpop.f32.mrb[0].mxu0
    %424 = vdwg.mxu0
    %v425 = vmax.f32 %v407, 0.0
    %v426 = vmax.f32 %v412, 0.0
    %v427 = vmax.f32 %v417, 0.0
    %v428 = vmax.f32 %v422, 0.0
    %v429 = vld [vmem:[%s6] sm:$0xff]
    %v430 = vld [vmem:[%s6 + $0x8] sm:$0xff]
    %v431 = vld [vmem:[%s6 + $0x10] sm:$0xff]
    %v432 = vld [vmem:[%s6 + $0x18] sm:$0xff]
    %v433 = vld [vmem:[%s7] sm:$0x1]
    %v434 = vmul.f32 %v206, %v425
    %v435 = vmul.f32 %v207, %v426
    %v436 = vmul.f32 %v208, %v427
    %v437 = vmul.f32 %v209, %v428
    %438 = vmatprep.subr.mxu0 0.0
    %439 = vmatpush1.msra.mxu0 %v434
    %440 = vmatprep.subr.mxu0 0.0
    %441 = vmatpush1.msra.mxu0 %v435
    %442 = vmatprep.subr.mxu0 0.0
    %443 = vmatpush1.msra.mxu0 %v436
    %444 = vmatprep.subr.mxu0 0.0
    %445 = vmatpush1.msra.mxu0 %v437
    %446 = vmatprep.subr.mxu0 0.0
    %447 = vmatpush1.msra.mxu0 0.0
    %448 = vmatprep.subr.mxu0 0.0
    %449 = vmatpush1.msra.mxu0 0.0
    %450 = vmatprep.subr.mxu0 0.0
    %451 = vmatpush1.msra.mxu0 0.0
    %452 = vmatprep.subr.mxu0 0.0
    %453 = vmatpush1.msra.mxu0 0.0
    %454 = vmatprep.subr.mxu0 0.0
    %455 = vmatpush1.msra.mxu0 0.0
    %456 = vmatprep.subr.mxu0 0.0
    %457 = vmatpush1.msra.mxu0 0.0
    %458 = vmatprep.subr.mxu0 0.0
    %459 = vmatpush1.msra.mxu0 0.0
    %460 = vmatprep.subr.mxu0 0.0
    %461 = vmatpush1.msra.mxu0 0.0
    %462 = vmatprep.subr.mxu0 0.0
    %463 = vmatpush1.msra.mxu0 0.0
    %464 = vmatprep.subr.mxu0 0.0
    %465 = vmatpush1.msra.mxu0 0.0
    %466 = vmatprep.subr.mxu0 0.0
    %467 = vmatpush1.msra.mxu0 0.0
    %468 = vmatprep.subr.mxu0 0.0
    %469 = vmatpush1.msra.mxu0 0.0
    %470 = vmatprep.subr.mxu0 0.0
    %471 = vmatpush1.msra.mxu0 0.0
    %472 = vmatprep.subr.mxu0 0.0
    %473 = vmatpush1.msra.mxu0 0.0
    %474 = vmatprep.subr.mxu0 0.0
    %475 = vmatpush1.msra.mxu0 0.0
    %476 = vmatprep.subr.mxu0 0.0
    %477 = vmatpush1.msra.mxu0 0.0
    %478 = vmatprep.subr.mxu0 0.0
    %479 = vmatpush1.msra.mxu0 0.0
    %480 = vmatprep.subr.mxu0 0.0
    %481 = vmatpush1.msra.mxu0 0.0
    %482 = vmatprep.subr.mxu0 0.0
    %483 = vmatpush1.msra.mxu0 0.0
    %484 = vmatprep.subr.mxu0 0.0
    %485 = vmatpush1.msra.mxu0 0.0
    %486 = vmatprep.subr.mxu0 0.0
    %487 = vmatpush1.msra.mxu0 0.0
    %488 = vmatprep.subr.mxu0 0.0
    %489 = vmatpush1.msra.mxu0 0.0
    %490 = vmatprep.subr.mxu0 0.0
    %491 = vmatpush1.msra.mxu0 0.0
    %492 = vmatprep.subr.mxu0 0.0
    %493 = vmatpush1.msra.mxu0 0.0
    %494 = vmatprep.subr.mxu0 0.0
    %495 = vmatpush1.msra.mxu0 0.0
    %496 = vmatprep.subr.mxu0 0.0
    %497 = vmatpush1.msra.mxu0 0.0
    %498 = vmatprep.subr.mxu0 0.0
    %499 = vmatpush1.msra.mxu0 0.0
    %500 = vmatprep.subr.mxu0 0.0
    %501 = vmatpush1.msra.mxu0 0.0
    %502 = vmatprep.mubr.f32.mxu0 0.0
    %503 = vmatmul.mubr.f32.gmra.mrb[0].mxu0 %v221
    %v504 = vpop.f32.mrb[0].mxu0
    %v505 = vadd.f32 0.0, %v504
    %v506 = vpop.f32.mrb[0].mxu0
    %507 = vmatprep.mubr.f32.mxu0 0.0
    %508 = vmatmul.mubr.f32.gmra.mrb[0].mxu0 %v224
    %v509 = vpop.f32.mrb[0].mxu0
    %v510 = vadd.f32 0.0, %v509
    %v511 = vpop.f32.mrb[0].mxu0
    %512 = vmatprep.mubr.f32.mxu0 0.0
    %513 = vmatmul.mubr.f32.gmra.mrb[0].mxu0 %v227
    %v514 = vpop.f32.mrb[0].mxu0
    %v515 = vadd.f32 0.0, %v514
    %v516 = vpop.f32.mrb[0].mxu0
    %517 = vmatprep.mubr.f32.mxu0 0.0
    %518 = vmatmul.mubr.f32.gmra.mrb[0].mxu0 %v230
    %v519 = vpop.f32.mrb[0].mxu0
    %v520 = vadd.f32 0.0, %v519
    %v521 = vpop.f32.mrb[0].mxu0
    %522 = vdwg.mxu0
    %v523 = vmul.f32 %v206, %v505
    %v524 = vmul.f32 %v207, %v510
    %v525 = vmul.f32 %v208, %v515
    %v526 = vmul.f32 %v209, %v520
    %v528 = vlaneseq
    %v529 = vshrl.u32 %v528, 7
    %v530 = vsub.s32 0, %v529
    %v531 = vrot.slane %v433, %v530
    %v534 = vsel %vm189, %v523, 0
    %v537 = vsel %vm189, %v524, 0
    %v540 = vsel %vm189, %v525, 0
    %v543 = vsel %vm189, %v526, 0
    %545 = vmatprep.subr.mxu0 0.0
    %546 = vmatpush1.msra.mxu0 %v429
    %547 = vmatprep.subr.mxu0 0.0
    %548 = vmatpush1.msra.mxu0 %v430
    %549 = vmatprep.subr.mxu0 0.0
    %550 = vmatpush1.msra.mxu0 %v431
    %551 = vmatprep.subr.mxu0 0.0
    %552 = vmatpush1.msra.mxu0 %v432
    %553 = vmatprep.subr.mxu0 0.0
    %554 = vmatpush1.msra.mxu0 0.0
    %555 = vmatprep.subr.mxu0 0.0
    %556 = vmatpush1.msra.mxu0 0.0
    %557 = vmatprep.subr.mxu0 0.0
    %558 = vmatpush1.msra.mxu0 0.0
    %559 = vmatprep.subr.mxu0 0.0
    %560 = vmatpush1.msra.mxu0 0.0
    %561 = vmatprep.subr.mxu0 0.0
    %562 = vmatpush1.msra.mxu0 0.0
    %563 = vmatprep.subr.mxu0 0.0
    %564 = vmatpush1.msra.mxu0 0.0
    %565 = vmatprep.subr.mxu0 0.0
    %566 = vmatpush1.msra.mxu0 0.0
    %567 = vmatprep.subr.mxu0 0.0
    %568 = vmatpush1.msra.mxu0 0.0
    %569 = vmatprep.subr.mxu0 0.0
    %570 = vmatpush1.msra.mxu0 0.0
    %571 = vmatprep.subr.mxu0 0.0
    %572 = vmatpush1.msra.mxu0 0.0
    %573 = vmatprep.subr.mxu0 0.0
    %574 = vmatpush1.msra.mxu0 0.0
    %575 = vmatprep.subr.mxu0 0.0
    %576 = vmatpush1.msra.mxu0 0.0
    %577 = vmatprep.subr.mxu0 0.0
    %578 = vmatpush1.msra.mxu0 0.0
    %579 = vmatprep.subr.mxu0 0.0
    %580 = vmatpush1.msra.mxu0 0.0
    %581 = vmatprep.subr.mxu0 0.0
    %582 = vmatpush1.msra.mxu0 0.0
    %583 = vmatprep.subr.mxu0 0.0
    %584 = vmatpush1.msra.mxu0 0.0
    %585 = vmatprep.subr.mxu0 0.0
    %586 = vmatpush1.msra.mxu0 0.0
    %587 = vmatprep.subr.mxu0 0.0
    %588 = vmatpush1.msra.mxu0 0.0
    %589 = vmatprep.subr.mxu0 0.0
    %590 = vmatpush1.msra.mxu0 0.0
    %591 = vmatprep.subr.mxu0 0.0
    %592 = vmatpush1.msra.mxu0 0.0
    %593 = vmatprep.subr.mxu0 0.0
    %594 = vmatpush1.msra.mxu0 0.0
    %595 = vmatprep.subr.mxu0 0.0
    %596 = vmatpush1.msra.mxu0 0.0
    %597 = vmatprep.subr.mxu0 0.0
    %598 = vmatpush1.msra.mxu0 0.0
    %599 = vmatprep.subr.mxu0 0.0
    %600 = vmatpush1.msra.mxu0 0.0
    %601 = vmatprep.subr.mxu0 0.0
    %602 = vmatpush1.msra.mxu0 0.0
    %603 = vmatprep.subr.mxu0 0.0
    %604 = vmatpush1.msra.mxu0 0.0
    %605 = vmatprep.subr.mxu0 0.0
    %606 = vmatpush1.msra.mxu0 0.0
    %607 = vmatprep.subr.mxu0 0.0
    %608 = vmatpush1.msra.mxu0 0.0
    %609 = vmatprep.mubr.f32.mxu0 0.0
    %610 = vmatmul.mubr.f32.gmra.mrb[0].mxu0 %v534
    %v611 = vpop.f32.mrb[0].mxu0
    %v612 = vadd.f32 %v531, %v611
    %v613 = vpop.f32.mrb[0].mxu0
    %614 = vmatprep.mubr.f32.mxu0 0.0
    %615 = vmatmul.mubr.f32.gmra.mrb[0].mxu0 %v537
    %v616 = vpop.f32.mrb[0].mxu0
    %v617 = vadd.f32 %v531, %v616
    %v618 = vpop.f32.mrb[0].mxu0
    %619 = vmatprep.mubr.f32.mxu0 0.0
    %620 = vmatmul.mubr.f32.gmra.mrb[0].mxu0 %v540
    %v621 = vpop.f32.mrb[0].mxu0
    %v622 = vadd.f32 %v531, %v621
    %v623 = vpop.f32.mrb[0].mxu0
    %624 = vmatprep.mubr.f32.mxu0 0.0
    %625 = vmatmul.mubr.f32.gmra.mrb[0].mxu0 %v543
    %v626 = vpop.f32.mrb[0].mxu0
    %v627 = vadd.f32 %v531, %v626
    %v628 = vpop.f32.mrb[0].mxu0
    %629 = vdwg.mxu0
    %v630 = vmax.f32 %v612, 0.0
    %v631 = vmax.f32 %v617, 0.0
    %v632 = vmax.f32 %v622, 0.0
    %v633 = vmax.f32 %v627, 0.0
    %v634 = vld [vmem:[%s8] sm:$0xff]
    %v635 = vld [vmem:[%s8 + $0x8] sm:$0xff]
    %v636 = vld [vmem:[%s8 + $0x10] sm:$0xff]
    %v637 = vld [vmem:[%s8 + $0x18] sm:$0xff]
    %v638 = vld [vmem:[%s9] sm:$0x1]
    %v639 = vmul.f32 %v206, %v630
    %v640 = vmul.f32 %v207, %v631
    %v641 = vmul.f32 %v208, %v632
    %v642 = vmul.f32 %v209, %v633
    %643 = vmatprep.subr.mxu0 0.0
    %644 = vmatpush1.msra.mxu0 %v639
    %645 = vmatprep.subr.mxu0 0.0
    %646 = vmatpush1.msra.mxu0 %v640
    %647 = vmatprep.subr.mxu0 0.0
    %648 = vmatpush1.msra.mxu0 %v641
    %649 = vmatprep.subr.mxu0 0.0
    %650 = vmatpush1.msra.mxu0 %v642
    %651 = vmatprep.subr.mxu0 0.0
    %652 = vmatpush1.msra.mxu0 0.0
    %653 = vmatprep.subr.mxu0 0.0
    %654 = vmatpush1.msra.mxu0 0.0
    %655 = vmatprep.subr.mxu0 0.0
    %656 = vmatpush1.msra.mxu0 0.0
    %657 = vmatprep.subr.mxu0 0.0
    %658 = vmatpush1.msra.mxu0 0.0
    %659 = vmatprep.subr.mxu0 0.0
    %660 = vmatpush1.msra.mxu0 0.0
    %661 = vmatprep.subr.mxu0 0.0
    %662 = vmatpush1.msra.mxu0 0.0
    %663 = vmatprep.subr.mxu0 0.0
    %664 = vmatpush1.msra.mxu0 0.0
    %665 = vmatprep.subr.mxu0 0.0
    %666 = vmatpush1.msra.mxu0 0.0
    %667 = vmatprep.subr.mxu0 0.0
    %668 = vmatpush1.msra.mxu0 0.0
    %669 = vmatprep.subr.mxu0 0.0
    %670 = vmatpush1.msra.mxu0 0.0
    %671 = vmatprep.subr.mxu0 0.0
    %672 = vmatpush1.msra.mxu0 0.0
    %673 = vmatprep.subr.mxu0 0.0
    %674 = vmatpush1.msra.mxu0 0.0
    %675 = vmatprep.subr.mxu0 0.0
    %676 = vmatpush1.msra.mxu0 0.0
    %677 = vmatprep.subr.mxu0 0.0
    %678 = vmatpush1.msra.mxu0 0.0
    %679 = vmatprep.subr.mxu0 0.0
    %680 = vmatpush1.msra.mxu0 0.0
    %681 = vmatprep.subr.mxu0 0.0
    %682 = vmatpush1.msra.mxu0 0.0
    %683 = vmatprep.subr.mxu0 0.0
    %684 = vmatpush1.msra.mxu0 0.0
    %685 = vmatprep.subr.mxu0 0.0
    %686 = vmatpush1.msra.mxu0 0.0
    %687 = vmatprep.subr.mxu0 0.0
    %688 = vmatpush1.msra.mxu0 0.0
    %689 = vmatprep.subr.mxu0 0.0
    %690 = vmatpush1.msra.mxu0 0.0
    %691 = vmatprep.subr.mxu0 0.0
    %692 = vmatpush1.msra.mxu0 0.0
    %693 = vmatprep.subr.mxu0 0.0
    %694 = vmatpush1.msra.mxu0 0.0
    %695 = vmatprep.subr.mxu0 0.0
    %696 = vmatpush1.msra.mxu0 0.0
    %697 = vmatprep.subr.mxu0 0.0
    %698 = vmatpush1.msra.mxu0 0.0
    %699 = vmatprep.subr.mxu0 0.0
    %700 = vmatpush1.msra.mxu0 0.0
    %701 = vmatprep.subr.mxu0 0.0
    %702 = vmatpush1.msra.mxu0 0.0
    %703 = vmatprep.subr.mxu0 0.0
    %704 = vmatpush1.msra.mxu0 0.0
    %705 = vmatprep.subr.mxu0 0.0
    %706 = vmatpush1.msra.mxu0 0.0
    %707 = vmatprep.mubr.f32.mxu0 0.0
    %708 = vmatmul.mubr.f32.gmra.mrb[0].mxu0 %v221
    %v709 = vpop.f32.mrb[0].mxu0
    %v710 = vadd.f32 0.0, %v709
    %v711 = vpop.f32.mrb[0].mxu0
    %712 = vmatprep.mubr.f32.mxu0 0.0
    %713 = vmatmul.mubr.f32.gmra.mrb[0].mxu0 %v224
    %v714 = vpop.f32.mrb[0].mxu0
    %v715 = vadd.f32 0.0, %v714
    %v716 = vpop.f32.mrb[0].mxu0
    %717 = vmatprep.mubr.f32.mxu0 0.0
    %718 = vmatmul.mubr.f32.gmra.mrb[0].mxu0 %v227
    %v719 = vpop.f32.mrb[0].mxu0
    %v720 = vadd.f32 0.0, %v719
    %v721 = vpop.f32.mrb[0].mxu0
    %722 = vmatprep.mubr.f32.mxu0 0.0
    %723 = vmatmul.mubr.f32.gmra.mrb[0].mxu0 %v230
    %v724 = vpop.f32.mrb[0].mxu0
    %v725 = vadd.f32 0.0, %v724
    %v726 = vpop.f32.mrb[0].mxu0
    %727 = vdwg.mxu0
    %v728 = vmul.f32 %v206, %v710
    %v729 = vmul.f32 %v207, %v715
    %v730 = vmul.f32 %v208, %v720
    %v731 = vmul.f32 %v209, %v725
    %v733 = vlaneseq
    %v734 = vshrl.u32 %v733, 7
    %v735 = vsub.s32 0, %v734
    %v736 = vrot.slane %v638, %v735
    %v739 = vsel %vm189, %v728, 0
    %v742 = vsel %vm189, %v729, 0
    %v745 = vsel %vm189, %v730, 0
    %v748 = vsel %vm189, %v731, 0
    %750 = vmatprep.subr.mxu0 0.0
    %751 = vmatpush1.msra.mxu0 %v634
    %752 = vmatprep.subr.mxu0 0.0
    %753 = vmatpush1.msra.mxu0 %v635
    %754 = vmatprep.subr.mxu0 0.0
    %755 = vmatpush1.msra.mxu0 %v636
    %756 = vmatprep.subr.mxu0 0.0
    %757 = vmatpush1.msra.mxu0 %v637
    %758 = vmatprep.subr.mxu0 0.0
    %759 = vmatpush1.msra.mxu0 0.0
    %760 = vmatprep.subr.mxu0 0.0
    %761 = vmatpush1.msra.mxu0 0.0
    %762 = vmatprep.subr.mxu0 0.0
    %763 = vmatpush1.msra.mxu0 0.0
    %764 = vmatprep.subr.mxu0 0.0
    %765 = vmatpush1.msra.mxu0 0.0
    %766 = vmatprep.subr.mxu0 0.0
    %767 = vmatpush1.msra.mxu0 0.0
    %768 = vmatprep.subr.mxu0 0.0
    %769 = vmatpush1.msra.mxu0 0.0
    %770 = vmatprep.subr.mxu0 0.0
    %771 = vmatpush1.msra.mxu0 0.0
    %772 = vmatprep.subr.mxu0 0.0
    %773 = vmatpush1.msra.mxu0 0.0
    %774 = vmatprep.subr.mxu0 0.0
    %775 = vmatpush1.msra.mxu0 0.0
    %776 = vmatprep.subr.mxu0 0.0
    %777 = vmatpush1.msra.mxu0 0.0
    %778 = vmatprep.subr.mxu0 0.0
    %779 = vmatpush1.msra.mxu0 0.0
    %780 = vmatprep.subr.mxu0 0.0
    %781 = vmatpush1.msra.mxu0 0.0
    %782 = vmatprep.subr.mxu0 0.0
    %783 = vmatpush1.msra.mxu0 0.0
    %784 = vmatprep.subr.mxu0 0.0
    %785 = vmatpush1.msra.mxu0 0.0
    %786 = vmatprep.subr.mxu0 0.0
    %787 = vmatpush1.msra.mxu0 0.0
    %788 = vmatprep.subr.mxu0 0.0
    %789 = vmatpush1.msra.mxu0 0.0
    %790 = vmatprep.subr.mxu0 0.0
    %791 = vmatpush1.msra.mxu0 0.0
    %792 = vmatprep.subr.mxu0 0.0
    %793 = vmatpush1.msra.mxu0 0.0
    %794 = vmatprep.subr.mxu0 0.0
    %795 = vmatpush1.msra.mxu0 0.0
    %796 = vmatprep.subr.mxu0 0.0
    %797 = vmatpush1.msra.mxu0 0.0
    %798 = vmatprep.subr.mxu0 0.0
    %799 = vmatpush1.msra.mxu0 0.0
    %800 = vmatprep.subr.mxu0 0.0
    %801 = vmatpush1.msra.mxu0 0.0
    %802 = vmatprep.subr.mxu0 0.0
    %803 = vmatpush1.msra.mxu0 0.0
    %804 = vmatprep.subr.mxu0 0.0
    %805 = vmatpush1.msra.mxu0 0.0
    %806 = vmatprep.subr.mxu0 0.0
    %807 = vmatpush1.msra.mxu0 0.0
    %808 = vmatprep.subr.mxu0 0.0
    %809 = vmatpush1.msra.mxu0 0.0
    %810 = vmatprep.subr.mxu0 0.0
    %811 = vmatpush1.msra.mxu0 0.0
    %812 = vmatprep.subr.mxu0 0.0
    %813 = vmatpush1.msra.mxu0 0.0
    %814 = vmatprep.mubr.f32.mxu0 0.0
    %815 = vmatmul.mubr.f32.gmra.mrb[0].mxu0 %v739
    %v816 = vpop.f32.mrb[0].mxu0
    %v817 = vadd.f32 %v736, %v816
    %v818 = vpop.f32.mrb[0].mxu0
    %819 = vmatprep.mubr.f32.mxu0 0.0
    %820 = vmatmul.mubr.f32.gmra.mrb[0].mxu0 %v742
    %v821 = vpop.f32.mrb[0].mxu0
    %v822 = vadd.f32 %v736, %v821
    %v823 = vpop.f32.mrb[0].mxu0
    %824 = vmatprep.mubr.f32.mxu0 0.0
    %825 = vmatmul.mubr.f32.gmra.mrb[0].mxu0 %v745
    %v826 = vpop.f32.mrb[0].mxu0
    %v827 = vadd.f32 %v736, %v826
    %v828 = vpop.f32.mrb[0].mxu0
    %829 = vmatprep.mubr.f32.mxu0 0.0
    %830 = vmatmul.mubr.f32.gmra.mrb[0].mxu0 %v748
    %v831 = vpop.f32.mrb[0].mxu0
    %v832 = vadd.f32 %v736, %v831
    %v833 = vpop.f32.mrb[0].mxu0
    %834 = vdwg.mxu0
    %835 = vst [vmem:[#allocation7] sm:$0xff] %v817
    %836 = vst [vmem:[#allocation7 + $0x8] sm:$0xff] %v822
    %837 = vst [vmem:[#allocation7 + $0x10] sm:$0xff] %v827
    %838 = vst [vmem:[#allocation7 + $0x18] sm:$0xff] %v832
    // Predicated region
    $region50: #{tpu_custom_call.1} parent=1 // pred_check
      _
    $region51: #{tpu_custom_call.1} parent=1 // pred_check_branch
      %840 = sbr.rel (0) target = $region53
    $region52: #{tpu_custom_call.1} parent=1 // pred_region
      %s842 = ssub.s32 512, 512
      %843 = vsyncadd [#allocation4], %s842
      %s844 = sshll.u32 [#allocation7], 4
      %s845 = int_to_ptr.vmem [resolvable:$true] %s844
      %850 = dma.vmem_to_hbm [thread:$0]  %s845, 512, %s10, [#allocation4], 128, 128, 8
    $region53: #{tpu_custom_call.1} parent=1 // pred_fallthru
      _
    // Predicated region
    $region54: #{tpu_custom_call.1} parent=1 // pred_check
      _
    $region55: #{tpu_custom_call.1} parent=1 // pred_check_branch
      %852 = sbr.rel (0) target = $region57
    $region56: #{tpu_custom_call.1} parent=1 // pred_region
      %853 = dma.done [#allocation4], 512
    $region57: #{tpu_custom_call.1} parent=1 // pred_fallthru
      _
    %854 = vsyncpa [#allocation3], 1
    %855 = vsyncpa [#allocation6], 1
    %856 = vsyncpa [#allocation4], 1

</llo_original>
